<compile_context>
chip_gen: v5e
topology: v5e:2x2
jax: 0.10.0
libtpu: 0.0.40
codegen_flags: <defaults>
</compile_context>

<pallas_src>
import math
import functools

import jax
import jax.numpy as jnp
from jax import lax
from jax.experimental import pallas as pl
from jax.experimental.pallas import tpu as pltpu

LANE = 128


def _round_up(x, m):
    return (x + m - 1) // m * m


def _convblock_kernel(x_ref, w1_ref, b1_ref, w2_ref, b2_ref, o_ref, *, K):
    """One grid step processes NB batch elements; NB*L is the matmul M dim.

    x_ref : (NB, L + 2*pad, Cin)  zero-padded input, channels-last
    w1_ref: (K, Cin, Dp)          conv1 taps, output channels lane-padded to Dp
    b1_ref: (1, Dp)
    w2_ref: (K*Dp, Doutp)         conv2 in im2col layout, lane-padded
    b2_ref: (1, Doutp)
    o_ref : (NB, L, Doutp)        lane-dense output (Doutp multiple of 128)
    """
    NB, Lp, Cin = x_ref.shape
    _, L, Doutp = o_ref.shape
    Dp = w1_ref.shape[2]
    pad = (K - 1) // 2

    xp = x_ref[...]  # (NB, Lp, Cin)

    # ---- conv1 + ReLU: K small taps, all NB*L rows through the MXU at once ----
    acc1 = jnp.zeros((NB * L, Dp), jnp.float32)
    for k in range(K):  # static unroll over kernel taps
        xk = xp[:, k:k + L, :].reshape(NB * L, Cin)
        acc1 = acc1 + jnp.dot(xk, w1_ref[k], preferred_element_type=jnp.float32)
    h = jnp.maximum(acc1 + b1_ref[...], 0.0)  # (NB*L, Dp) f32, stays in vregs

    # ---- conv2 + ReLU: single im2col matmul, no VMEM scratch round-trip -------
    h3 = h.reshape(NB, L, Dp)
    if pad > 0:
        # pad with whole sublane tiles (multiple of 8 rows) so the concat along
        # the sublane axis is tiling-aligned; shifted views then use plain
        # (cheap) sublane-offset value slices.
        pad8 = _round_up(pad, 8)
        zrows = jnp.zeros((NB, pad8, Dp), h3.dtype)
        hp = jnp.concatenate([zrows, h3, zrows], axis=1)   # (NB, L + 2*pad8, Dp)
        off = pad8 - pad
    else:
        hp, off = h3, 0
    views = [hp[:, off + k: off + k + L, :] for k in range(K)]  # each (NB, L, Dp)
    # lane concat of 128-wide (aligned) pieces -> (NB, L, K*Dp)
    h_unf = views[0] if K == 1 else jnp.concatenate(views, axis=2)
    h2d = h_unf.reshape(NB * L, K * Dp).astype(w2_ref.dtype)
    acc2 = jnp.dot(h2d, w2_ref[...], preferred_element_type=jnp.float32)
    y = jnp.maximum(acc2 + b2_ref[...], 0.0)                # (NB*L, Doutp)

    o_ref[...] = y.reshape(NB, L, Doutp).astype(o_ref.dtype)


def _pick_batch_block(N, Lp, L, Cin, Dp, Doutp, K, itemsize=4,
                      bytes_budget=8 << 20):
    """Largest divisor of N whose per-step VMEM footprint fits the budget."""
    per_elem = (2 * itemsize * (Lp * Cin + L * Doutp)   # double-buffered in/out
                + 4 * L * Dp * (K + 1))                 # h + its im2col expansion
    nb = max(1, min(N, bytes_budget // max(per_elem, 1)))
    while N % nb:
        nb -= 1
    return nb


def conv_block_pallas(x_ncl, w1, b1, w2, b2, kernel_size, *,
                      batch_block=None, compute_dtype=jnp.float32):
    """ConvBlock forward.

    x_ncl: (N, Cin, L) float32 (torch NCL layout)
    w1:    (D, Cin, K), b1: (D,)     torch Conv1d parameter layout
    w2:    (Dout, D, K), b2: (Dout,)
    compute_dtype=jnp.bfloat16 halves DMA bytes and doubles MXU rate on
    v5e/v6e/v7x; accumulation stays f32.
    """
    N, Cin, L = x_ncl.shape
    D, Cin_w, K = w1.shape
    Dout = w2.shape[0]
    assert Cin_w == Cin and kernel_size == K and w2.shape[1:] == (D, K)
    assert K % 2 == 1, "only odd kernel_size supported"
    # TODO(synk): even kernel_size needs torch's asymmetric 'same' padding.
    pad = (K - 1) // 2
    Lp = L + 2 * pad

    # lane-pad channel dims to 128 -> lane-dense matmul outputs and HBM stores.
    Dp = _round_up(D, LANE)
    Doutp = _round_up(Dout, LANE)

    # --- wrapper glue (each line is a single small fused XLA pass) -------------
    # NCL -> NLC (channels on lanes) with the 'same' zero pad fused in.
    x_pad = jnp.pad(jnp.transpose(x_ncl, (0, 2, 1)),
                    ((0, 0), (pad, pad), (0, 0))).astype(compute_dtype)
    # TODO(synk): for long sequences, tile L in the grid with a K-1 halo instead
    # of a single full-length block (keeps VMEM bounded on v7x).

    w1_p = jnp.pad(jnp.transpose(w1, (2, 1, 0)),
                   ((0, 0), (0, 0), (0, Dp - D))).astype(compute_dtype)   # (K, Cin, Dp)
    b1_p = jnp.pad(b1, (0, Dp - D)).reshape(1, Dp).astype(jnp.float32)
    w2_p = jnp.pad(jnp.transpose(w2, (2, 1, 0)),
                   ((0, 0), (0, Dp - D), (0, Doutp - Dout)))
    w2_u = w2_p.reshape(K * Dp, Doutp).astype(compute_dtype)              # im2col
    b2_p = jnp.pad(b2, (0, Doutp - Dout)).reshape(1, Doutp).astype(jnp.float32)

    NB = batch_block if batch_block is not None else _pick_batch_block(
        N, Lp, L, Cin, Dp, Doutp, K, itemsize=jnp.dtype(compute_dtype).itemsize)
    assert N % NB == 0, "batch_block must divide N"

    out_nlc = pl.pallas_call(
        functools.partial(_convblock_kernel, K=K),
        out_shape=jax.ShapeDtypeStruct((N, L, Doutp), jnp.float32),
        grid_spec=pltpu.PrefetchScalarGridSpec(
            num_scalar_prefetch=0,
            grid=(N // NB,),
            in_specs=[
                pl.BlockSpec((NB, Lp, Cin), lambda n: (n, 0, 0)),
                pl.BlockSpec((K, Cin, Dp), lambda n: (0, 0, 0)),
                pl.BlockSpec((1, Dp), lambda n: (0, 0)),
                pl.BlockSpec((K * Dp, Doutp), lambda n: (0, 0)),
                pl.BlockSpec((1, Doutp), lambda n: (0, 0)),
            ],
            out_specs=pl.BlockSpec((NB, L, Doutp), lambda n: (n, 0, 0)),
        ),
        compiler_params=pltpu.CompilerParams(
            dimension_semantics=("parallel",)),
    )(x_pad, w1_p, b1_p, w2_u, b2_p)

    # drop lane padding, back to torch NCL (fuses into one XLA op)
    return jnp.transpose(out_nlc[:, :, :Dout], (0, 2, 1))


# ----------------------------- parameter init --------------------------------
def _xavier_uniform(key, shape):
    # torch Conv1d weight (out, in, K): fan_in = in*K, fan_out = out*K
    fan_out, fan_in, k = shape
    bound = math.sqrt(6.0 / (fan_in * k + fan_out * k))
    return jax.random.uniform(key, shape, jnp.float32, -bound, bound)


def _conv_bias(key, out_ch, fan_in):
    bound = 1.0 / math.sqrt(fan_in)
    return jax.random.uniform(key, (out_ch,), jnp.float32, -bound, bound)


# ----------------------------- reference (pure JAX) ---------------------------
def _ref_conv_block(x_ncl, w1, b1, w2, b2):
    def conv1d_same(x, w, b):
        y = lax.conv_general_dilated(
            x, w, window_strides=(1,), padding="SAME",
            dimension_numbers=("NCH", "OIH", "NCH"))
        return y + b[None, :, None]
    h = jnp.maximum(conv1d_same(x_ncl, w1, b1), 0.0)
    return jnp.maximum(conv1d_same(h, w2, b2), 0.0)


if __name__ == "__main__":
    key = jax.random.PRNGKey(0)
    k_x, k_w1, k_b1, k_w2, k_b2 = jax.random.split(key, 5)

    # shapes consistent with ConvBlock(kernel_size=3, dim_in=4, dim=8, dim_out=4)
    N, Cin, L = 2, 4, 16
    D, Dout, K = 8, 4, 3

    x = jax.random.normal(k_x, (N, Cin, L), jnp.float32)
    w1 = _xavier_uniform(k_w1, (D, Cin, K))
    b1 = _conv_bias(k_b1, D, Cin * K)
    w2 = _xavier_uniform(k_w2, (Dout, D, K))
    b2 = _conv_bias(k_b2, Dout, D * K)

    out = conv_block_pallas(x, w1, b1, w2, b2, kernel_size=K)
    out = jax.block_until_ready(out)

    ref = _ref_conv_block(x, w1, b1, w2, b2)
    assert out.shape == (N, Dout, L)
    assert jnp.allclose(out, ref, atol=1e-5, rtol=1e-5), "mismatch vs reference"

    print("KERNEL_OK")
</pallas_src>

<mosaic_0001>
module attributes {stable_mosaic.version = 11 : i64} {
  func.func @_convblock_kernel(%arg0: i32, %arg1: memref<2x18x4xf32, #tpu.memory_space<vmem>>, %arg2: memref<3x4x128xf32, #tpu.memory_space<vmem>>, %arg3: memref<1x128xf32, #tpu.memory_space<vmem>>, %arg4: memref<384x128xf32, #tpu.memory_space<vmem>>, %arg5: memref<1x128xf32, #tpu.memory_space<vmem>>, %arg6: memref<2x16x128xf32, #tpu.memory_space<vmem>>) attributes {dimension_semantics = [#tpu.dimension_semantics<parallel>], iteration_bounds = array<i64: 1>, scalar_prefetch = 0 : i64, scratch_operands = 0 : i64, tpu.core_type = #tpu.core_type<tc>, window_params = [{transform_indices = @transform_0, window_bounds = array<i64: 2, 18, 4>}, {pipeline_mode = #tpu.pipeline_mode<synchronous>, transform_indices = @transform_1, window_bounds = array<i64: 3, 4, 128>}, {pipeline_mode = #tpu.pipeline_mode<synchronous>, transform_indices = @transform_2, window_bounds = array<i64: 1, 128>}, {pipeline_mode = #tpu.pipeline_mode<synchronous>, transform_indices = @transform_3, window_bounds = array<i64: 384, 128>}, {pipeline_mode = #tpu.pipeline_mode<synchronous>, transform_indices = @transform_4, window_bounds = array<i64: 1, 128>}, {transform_indices = @transform_5, window_bounds = array<i64: 2, 16, 128>}]} {
    %c0 = arith.constant 0 : index
    %c0_0 = arith.constant 0 : index
    %c0_1 = arith.constant 0 : index
    %0 = vector.load %arg1[%c0, %c0_0, %c0_1] : memref<2x18x4xf32, #tpu.memory_space<vmem>>, vector<2x18x4xf32>
    %cst = arith.constant 0.000000e+00 : f32
    %1 = vector.broadcast %cst : f32 to vector<32x128xf32>
    %2 = vector.extract_strided_slice %0 {offsets = [0, 0, 0], sizes = [2, 16, 4], strides = [1, 1, 1]} : vector<2x18x4xf32> to vector<2x16x4xf32>
    %3 = vector.shape_cast %2 : vector<2x16x4xf32> to vector<32x4xf32>
    %c0_2 = arith.constant 0 : index
    %c0_3 = arith.constant 0 : index
    %c0_4 = arith.constant 0 : index
    %4 = vector.load %arg2[%c0_2, %c0_3, %c0_4] : memref<3x4x128xf32, #tpu.memory_space<vmem>>, vector<1x4x128xf32>
    %5 = vector.shape_cast %4 : vector<1x4x128xf32> to vector<4x128xf32>
    %cst_5 = arith.constant dense<0.000000e+00> : vector<32x128xf32>
    %6 = tpu.matmul %3, %5, %cst_5 {dimension_numbers = #tpu.dot_dimension_numbers<[1], [0], [0], [1], [0, 0, 1, 1], [], []>} : vector<32x4xf32>, vector<4x128xf32>, vector<32x128xf32> -> vector<32x128xf32>
    %7 = arith.addf %1, %6 : vector<32x128xf32>
    %8 = vector.extract_strided_slice %0 {offsets = [0, 1, 0], sizes = [2, 16, 4], strides = [1, 1, 1]} : vector<2x18x4xf32> to vector<2x16x4xf32>
    %9 = vector.shape_cast %8 : vector<2x16x4xf32> to vector<32x4xf32>
    %c1 = arith.constant 1 : index
    %c0_6 = arith.constant 0 : index
    %c0_7 = arith.constant 0 : index
    %10 = vector.load %arg2[%c1, %c0_6, %c0_7] : memref<3x4x128xf32, #tpu.memory_space<vmem>>, vector<1x4x128xf32>
    %11 = vector.shape_cast %10 : vector<1x4x128xf32> to vector<4x128xf32>
    %cst_8 = arith.constant dense<0.000000e+00> : vector<32x128xf32>
    %12 = tpu.matmul %9, %11, %cst_8 {dimension_numbers = #tpu.dot_dimension_numbers<[1], [0], [0], [1], [0, 0, 1, 1], [], []>} : vector<32x4xf32>, vector<4x128xf32>, vector<32x128xf32> -> vector<32x128xf32>
    %13 = arith.addf %7, %12 : vector<32x128xf32>
    %14 = vector.extract_strided_slice %0 {offsets = [0, 2, 0], sizes = [2, 16, 4], strides = [1, 1, 1]} : vector<2x18x4xf32> to vector<2x16x4xf32>
    %15 = vector.shape_cast %14 : vector<2x16x4xf32> to vector<32x4xf32>
    %c2 = arith.constant 2 : index
    %c0_9 = arith.constant 0 : index
    %c0_10 = arith.constant 0 : index
    %16 = vector.load %arg2[%c2, %c0_9, %c0_10] : memref<3x4x128xf32, #tpu.memory_space<vmem>>, vector<1x4x128xf32>
    %17 = vector.shape_cast %16 : vector<1x4x128xf32> to vector<4x128xf32>
    %cst_11 = arith.constant dense<0.000000e+00> : vector<32x128xf32>
    %18 = tpu.matmul %15, %17, %cst_11 {dimension_numbers = #tpu.dot_dimension_numbers<[1], [0], [0], [1], [0, 0, 1, 1], [], []>} : vector<32x4xf32>, vector<4x128xf32>, vector<32x128xf32> -> vector<32x128xf32>
    %19 = arith.addf %13, %18 : vector<32x128xf32>
    %c0_12 = arith.constant 0 : index
    %c0_13 = arith.constant 0 : index
    %20 = vector.load %arg3[%c0_12, %c0_13] : memref<1x128xf32, #tpu.memory_space<vmem>>, vector<1x128xf32>
    %21 = vector.broadcast %20 : vector<1x128xf32> to vector<32x128xf32>
    %22 = arith.addf %19, %21 : vector<32x128xf32>
    %cst_14 = arith.constant 0.000000e+00 : f32
    %23 = vector.broadcast %cst_14 : f32 to vector<32x128xf32>
    %24 = arith.maximumf %22, %23 : vector<32x128xf32>
    %25 = vector.shape_cast %24 : vector<32x128xf32> to vector<2x16x128xf32>
    %cst_15 = arith.constant 0.000000e+00 : f32
    %26 = vector.broadcast %cst_15 : f32 to vector<2x8x128xf32>
    %27 = tpu.concatenate %26, %25, %26 in 1 : vector<2x8x128xf32>, vector<2x16x128xf32>, vector<2x8x128xf32> -> vector<2x32x128xf32>
    %28 = vector.extract_strided_slice %27 {offsets = [0, 7, 0], sizes = [2, 16, 128], strides = [1, 1, 1]} : vector<2x32x128xf32> to vector<2x16x128xf32>
    %29 = vector.extract_strided_slice %27 {offsets = [0, 8, 0], sizes = [2, 16, 128], strides = [1, 1, 1]} : vector<2x32x128xf32> to vector<2x16x128xf32>
    %30 = vector.extract_strided_slice %27 {offsets = [0, 9, 0], sizes = [2, 16, 128], strides = [1, 1, 1]} : vector<2x32x128xf32> to vector<2x16x128xf32>
    %31 = tpu.concatenate %28, %29, %30 in 2 : vector<2x16x128xf32>, vector<2x16x128xf32>, vector<2x16x128xf32> -> vector<2x16x384xf32>
    %32 = vector.shape_cast %31 : vector<2x16x384xf32> to vector<32x384xf32>
    %c0_16 = arith.constant 0 : index
    %c0_17 = arith.constant 0 : index
    %33 = vector.load %arg4[%c0_16, %c0_17] : memref<384x128xf32, #tpu.memory_space<vmem>>, vector<384x128xf32>
    %cst_18 = arith.constant dense<0.000000e+00> : vector<32x128xf32>
    %34 = tpu.matmul %32, %33, %cst_18 {dimension_numbers = #tpu.dot_dimension_numbers<[1], [0], [0], [1], [0, 0, 1, 1], [], []>} : vector<32x384xf32>, vector<384x128xf32>, vector<32x128xf32> -> vector<32x128xf32>
    %c0_19 = arith.constant 0 : index
    %c0_20 = arith.constant 0 : index
    %35 = vector.load %arg5[%c0_19, %c0_20] : memref<1x128xf32, #tpu.memory_space<vmem>>, vector<1x128xf32>
    %36 = vector.broadcast %35 : vector<1x128xf32> to vector<32x128xf32>
    %37 = arith.addf %34, %36 : vector<32x128xf32>
    %cst_21 = arith.constant 0.000000e+00 : f32
    %38 = vector.broadcast %cst_21 : f32 to vector<32x128xf32>
    %39 = arith.maximumf %37, %38 : vector<32x128xf32>
    %40 = vector.shape_cast %39 : vector<32x128xf32> to vector<2x16x128xf32>
    %c0_22 = arith.constant 0 : index
    %c0_23 = arith.constant 0 : index
    %c0_24 = arith.constant 0 : index
    %41 = vector.load %arg6[%c0_22, %c0_23, %c0_24] : memref<2x16x128xf32, #tpu.memory_space<vmem>>, vector<2x16x128xf32>
    tpu.vector_store %arg6[%c0_22, %c0_23, %c0_24], %40 {strides = array<i32>} : memref<2x16x128xf32, #tpu.memory_space<vmem>>, vector<2x16x128xf32>,
    return
  }
  func.func @transform_0(%arg0: i32) -> (i32, i32, i32) {
    %c0_i32 = arith.constant 0 : i32
    %c0_i32_0 = arith.constant 0 : i32
    %c0_i32_1 = arith.constant 0 : i32
    return %arg0, %c0_i32, %c0_i32_0 : i32, i32, i32
  }
  func.func @transform_1(%arg0: i32) -> (i32, i32, i32) {
    %c0_i32 = arith.constant 0 : i32
    %c0_i32_0 = arith.constant 0 : i32
    %c0_i32_1 = arith.constant 0 : i32
    %c0_i32_2 = arith.constant 0 : i32
    return %c0_i32, %c0_i32_0, %c0_i32_1 : i32, i32, i32
  }
  func.func @transform_2(%arg0: i32) -> (i32, i32) {
    %c0_i32 = arith.constant 0 : i32
    %c0_i32_0 = arith.constant 0 : i32
    %c0_i32_1 = arith.constant 0 : i32
    return %c0_i32, %c0_i32_0 : i32, i32
  }
  func.func @transform_3(%arg0: i32) -> (i32, i32) {
    %c0_i32 = arith.constant 0 : i32
    %c0_i32_0 = arith.constant 0 : i32
    %c0_i32_1 = arith.constant 0 : i32
    return %c0_i32, %c0_i32_0 : i32, i32
  }
  func.func @transform_4(%arg0: i32) -> (i32, i32) {
    %c0_i32 = arith.constant 0 : i32
    %c0_i32_0 = arith.constant 0 : i32
    %c0_i32_1 = arith.constant 0 : i32
    return %c0_i32, %c0_i32_0 : i32, i32
  }
  func.func @transform_5(%arg0: i32) -> (i32, i32, i32) {
    %c0_i32 = arith.constant 0 : i32
    %c0_i32_0 = arith.constant 0 : i32
    %c0_i32_1 = arith.constant 0 : i32
    return %arg0, %c0_i32, %c0_i32_0 : i32, i32, i32
  }
}

</mosaic_0001>

<llo_original>
// kernel: tpu_custom_call.1
$region0: #{tpu_custom_call.1}
  #allocation0 [shape = 'u32[]', space=smem, size = 0x4, offset = 0x4, fixed_abs, tag = 'smem constant byte address 0x4 - core index']
  #allocation1 [shape = 'u32[72,128]{1,0:T(1,128)}', space=vmem, size = 0x9000, scoped, tag = 'internal scratch']
  %s0 = inlined_call_operand.vmem [shape: f32[2,18,4], index: 0, kind: input, shape index: {}]
  %s1 = inlined_call_operand.vmem [shape: f32[3,4,128], index: 1, kind: input, shape index: {}]
  %s2 = inlined_call_operand.vmem [shape: f32[1,128], index: 2, kind: input, shape index: {}]
  %s3 = inlined_call_operand.hbm [shape: f32[384,128], index: 3, kind: input, shape index: {}]
  %s4 = inlined_call_operand.vmem [shape: f32[1,128], index: 4, kind: input, shape index: {}]
  %s5 = inlined_call_operand.hbm [shape: f32[2,16,128], index: 5, kind: output, shape index: {}]
  %s6 = sld [smem:[#allocation0]]
  $region34: #{tpu_custom_call.1} parent=0
    _
  %s8 = ssub.s32 1, %s6
  %s9 = scalar_select 0, %s8, %s6
  $region1: #{tpu_custom_call.1} parent=0
    #allocation2 [shape = 'u8[196608]{0}', space=vmem, size = 0x30000, scoped, tag = 'input window, operand 3, single buffered']
    #allocation3 [shape = 's32[1]{0}', space=sflag, size = 0x4, scoped, tag = 'scoped memory for tpu_custom_call.1']
    #allocation4 [shape = 's32[1]{0}', space=sflag, size = 0x4, scoped, tag = 'scoped memory for tpu_custom_call.1']
    #allocation5 [shape = 'u8[16384]{0}', space=vmem, size = 0x4000, scoped, tag = 'output window, operand 0, single buffered']
    %10 = vsyncpa [#allocation3], 0
    %11 = vsyncpa [#allocation4], 0
    // Predicated region
    $region2: #{tpu_custom_call.1} parent=1 // pred_check
      _
    $region3: #{tpu_custom_call.1} parent=1 // pred_check_branch
      %13 = sbr.rel (0) target = $region5
    $region4: #{tpu_custom_call.1} parent=1 // pred_region
      _
    $region5: #{tpu_custom_call.1} parent=1 // pred_fallthru
      _
    // Predicated region
    $region6: #{tpu_custom_call.1} parent=1 // pred_check
      _
    $region7: #{tpu_custom_call.1} parent=1 // pred_check_branch
      %15 = sbr.rel (0) target = $region9
    $region8: #{tpu_custom_call.1} parent=1 // pred_region
      _
    $region9: #{tpu_custom_call.1} parent=1 // pred_fallthru
      _
    // Predicated region
    $region10: #{tpu_custom_call.1} parent=1 // pred_check
      _
    $region11: #{tpu_custom_call.1} parent=1 // pred_check_branch
      %17 = sbr.rel (0) target = $region13
    $region12: #{tpu_custom_call.1} parent=1 // pred_region
      _
    $region13: #{tpu_custom_call.1} parent=1 // pred_fallthru
      _
    // Predicated region
    $region14: #{tpu_custom_call.1} parent=1 // pred_check
      _
    $region15: #{tpu_custom_call.1} parent=1 // pred_check_branch
      %19 = sbr.rel (0) target = $region17
    $region16: #{tpu_custom_call.1} parent=1 // pred_region
      %21 = vsyncadd [#allocation3], 0
      %s22 = sshll.u32 %s3, 4
      %s23 = int_to_ptr.hbm [resolvable:$true] %s22
      %s24 = sshll.u32 [#allocation2], 4
      %s25 = int_to_ptr.vmem [resolvable:$true] %s24
      %30 = dma.hbm_to_vmem [thread:$0]  %s23, 6144, %s25, [#allocation3], 128, 128, 8
    $region17: #{tpu_custom_call.1} parent=1 // pred_fallthru
      _
    // Predicated region
    $region18: #{tpu_custom_call.1} parent=1 // pred_check
      _
    $region19: #{tpu_custom_call.1} parent=1 // pred_check_branch
      %32 = sbr.rel (0) target = $region21
    $region20: #{tpu_custom_call.1} parent=1 // pred_region
      _
    $region21: #{tpu_custom_call.1} parent=1 // pred_fallthru
      _
    // Predicated region
    $region22: #{tpu_custom_call.1} parent=1 // pred_check
      _
    $region23: #{tpu_custom_call.1} parent=1 // pred_check_branch
      %34 = sbr.rel (0) target = $region25
    $region24: #{tpu_custom_call.1} parent=1 // pred_region
      %36 = dma.done [#allocation3], 6144
    $region25: #{tpu_custom_call.1} parent=1 // pred_fallthru
      _
    %v37 = vld [vmem:[%s0] sm:$0xff]
    %v38 = vld [vmem:[%s0 + $0x8] sm:$0xff]
    %v39 = vld [vmem:[%s0 + $0x10] sm:$0x3]
    %v40 = vld [vmem:[%s0 + $0x18] sm:$0xff]
    %v41 = vld [vmem:[%s0 + $0x20] sm:$0xff]
    %v42 = vld [vmem:[%s0 + $0x28] sm:$0x3]
    %v43 = vld [vmem:[%s1] sm:$0xf]
    %vm50 = vcmask 1046528
    %v51 = vrot.slane %v37, 1
    %v52 = vrot.slane %v38, 1
    %v53 = vsel %vm50, %v51, %v52
    %v54 = vrot.slane %v39, 1
    %v55 = vsel %vm50, %v52, %v54
    %v56 = vrot.slane %v40, 1
    %v57 = vrot.slane %v41, 1
    %v58 = vsel %vm50, %v56, %v57
    %v59 = vrot.slane %v42, 1
    %v60 = vsel %vm50, %v57, %v59
    %s61 = scalar_lea.vmem %s1, 4
    %v62 = vld [vmem:[%s61] sm:$0xf]
    %vm63 = vcmask 31744
    %v64 = vsel %vm63, %v53, 0
    %v66 = vsel %vm63, %v55, 0
    %v68 = vsel %vm63, %v58, 0
    %v70 = vsel %vm63, %v60, 0
    %vm72 = vcmask 1043456
    %v74 = vsel %vm72, %v62, 0
    %76 = vmatpush.msra.mxu0 0.0
    %77 = vmatpush.msra.mxu0 0.0
    %78 = vmatpush.msra.mxu0 0.0
    %79 = vmatpush.msra.mxu0 0.0
    %80 = vmatpush.msra.mxu0 0.0
    %81 = vmatpush.msra.mxu0 0.0
    %82 = vmatpush.msra.mxu0 0.0
    %83 = vmatpush.msra.mxu0 0.0
    %84 = vmatpush.msra.mxu0 0.0
    %85 = vmatpush.msra.mxu0 0.0
    %86 = vmatpush.msra.mxu0 0.0
    %87 = vmatpush.msra.mxu0 0.0
    %88 = vmatpush.msra.mxu0 0.0
    %89 = vmatpush.msra.mxu0 0.0
    %90 = vmatpush.msra.mxu0 0.0
    %91 = vmatpush.msra.mxu0 %v74
    %92 = vmatmul.f32.gmra.mxu0 %v64
    %v93 = vpop.f32.mrf.mxu0
    %v94 = vadd.f32 0.0, %v93
    %95 = vmatmul.f32.gmra.mxu0 %v66
    %v96 = vpop.f32.mrf.mxu0
    %v97 = vadd.f32 0.0, %v96
    %98 = vmatmul.f32.gmra.mxu0 %v68
    %v99 = vpop.f32.mrf.mxu0
    %v100 = vadd.f32 0.0, %v99
    %101 = vmatmul.f32.gmra.mxu0 %v70
    %v102 = vpop.f32.mrf.mxu0
    %v103 = vadd.f32 0.0, %v102
    %104 = vdwg.mxu0
    %v105 = vsel %vm63, %v37, 0
    %v107 = vsel %vm63, %v38, 0
    %v109 = vsel %vm63, %v40, 0
    %v111 = vsel %vm63, %v41, 0
    %v114 = vsel %vm72, %v43, 0
    %116 = vmatpush.msra.mxu0 0.0
    %117 = vmatpush.msra.mxu0 0.0
    %118 = vmatpush.msra.mxu0 0.0
    %119 = vmatpush.msra.mxu0 0.0
    %120 = vmatpush.msra.mxu0 0.0
    %121 = vmatpush.msra.mxu0 0.0
    %122 = vmatpush.msra.mxu0 0.0
    %123 = vmatpush.msra.mxu0 0.0
    %124 = vmatpush.msra.mxu0 0.0
    %125 = vmatpush.msra.mxu0 0.0
    %126 = vmatpush.msra.mxu0 0.0
    %127 = vmatpush.msra.mxu0 0.0
    %128 = vmatpush.msra.mxu0 0.0
    %129 = vmatpush.msra.mxu0 0.0
    %130 = vmatpush.msra.mxu0 0.0
    %131 = vmatpush.msra.mxu0 %v114
    %132 = vmatmul.f32.gmra.mxu0 %v105
    %v133 = vpop.f32.mrf.mxu0
    %v134 = vadd.f32 %v94, %v133
    %135 = vmatmul.f32.gmra.mxu0 %v107
    %v136 = vpop.f32.mrf.mxu0
    %v137 = vadd.f32 %v97, %v136
    %138 = vmatmul.f32.gmra.mxu0 %v109
    %v139 = vpop.f32.mrf.mxu0
    %v140 = vadd.f32 %v100, %v139
    %141 = vmatmul.f32.gmra.mxu0 %v111
    %v142 = vpop.f32.mrf.mxu0
    %v143 = vadd.f32 %v103, %v142
    %144 = vdwg.mxu0
    %vm145 = vcmask 1045504
    %v146 = vrot.slane %v37, 2
    %v147 = vrot.slane %v38, 2
    %v148 = vsel %vm145, %v146, %v147
    %v149 = vrot.slane %v39, 2
    %v150 = vsel %vm145, %v147, %v149
    %v151 = vrot.slane %v40, 2
    %v152 = vrot.slane %v41, 2
    %v153 = vsel %vm145, %v151, %v152
    %v154 = vrot.slane %v42, 2
    %v155 = vsel %vm145, %v152, %v154
    %s156 = scalar_lea.vmem %s1, 8
    %v157 = vld [vmem:[%s156] sm:$0xf]
    %v158 = vsel %vm63, %v148, 0
    %v160 = vsel %vm63, %v150, 0
    %v162 = vsel %vm63, %v153, 0
    %v164 = vsel %vm63, %v155, 0
    %v167 = vsel %vm72, %v157, 0
    %169 = vmatpush.msra.mxu0 0.0
    %170 = vmatpush.msra.mxu0 0.0
    %171 = vmatpush.msra.mxu0 0.0
    %172 = vmatpush.msra.mxu0 0.0
    %173 = vmatpush.msra.mxu0 0.0
    %174 = vmatpush.msra.mxu0 0.0
    %175 = vmatpush.msra.mxu0 0.0
    %176 = vmatpush.msra.mxu0 0.0
    %177 = vmatpush.msra.mxu0 0.0
    %178 = vmatpush.msra.mxu0 0.0
    %179 = vmatpush.msra.mxu0 0.0
    %180 = vmatpush.msra.mxu0 0.0
    %181 = vmatpush.msra.mxu0 0.0
    %182 = vmatpush.msra.mxu0 0.0
    %183 = vmatpush.msra.mxu0 0.0
    %184 = vmatpush.msra.mxu0 %v167
    %185 = vmatmul.f32.gmra.mxu0 %v158
    %v186 = vpop.f32.mrf.mxu0
    %v187 = vadd.f32 0.0, %v186
    %188 = vmatmul.f32.gmra.mxu0 %v160
    %v189 = vpop.f32.mrf.mxu0
    %v190 = vadd.f32 0.0, %v189
    %191 = vmatmul.f32.gmra.mxu0 %v162
    %v192 = vpop.f32.mrf.mxu0
    %v193 = vadd.f32 0.0, %v192
    %194 = vmatmul.f32.gmra.mxu0 %v164
    %v195 = vpop.f32.mrf.mxu0
    %v196 = vadd.f32 0.0, %v195
    %197 = vdwg.mxu0
    %v198 = vadd.f32 %v134, %v187
    %v199 = vadd.f32 %v137, %v190
    %v200 = vadd.f32 %v140, %v193
    %v201 = vadd.f32 %v143, %v196
    %v202 = vld [vmem:[%s2] sm:$0x1]
    %v204 = vperm.slane %v202, 0
    %v206 = vadd.f32 %v198, %v204
    %v207 = vadd.f32 %v199, %v204
    %v208 = vadd.f32 %v200, %v204
    %v209 = vadd.f32 %v201, %v204
    %v210 = vmax.f32 %v206, 0.0
    %v211 = vmax.f32 %v207, 0.0
    %v212 = vmax.f32 %v208, 0.0
    %v213 = vmax.f32 %v209, 0.0
    %v218 = vrot.slane %v210, 1
    %v219 = vrot.slane %v211, 1
    %v220 = vsel %vm50, %v218, %v219
    %v221 = vrot.slane %v212, 1
    %v222 = vrot.slane %v213, 1
    %v223 = vsel %vm50, %v221, %v222
    %v225 = vrot.slane %v210, 2
    %v226 = vrot.slane %v211, 2
    %v227 = vsel %vm145, %v225, %v226
    %v228 = vrot.slane 0.0, 2
    %v229 = vsel %vm145, %v226, %v228
    %v230 = vrot.slane %v212, 2
    %v231 = vrot.slane %v213, 2
    %v232 = vsel %vm145, %v230, %v231
    %v233 = vsel %vm145, %v231, %v228
    %vm234 = vcmask 1040384
    %v235 = vrot.slane 0.0, 7
    %v236 = vrot.slane %v210, 7
    %v237 = vsel %vm234, %v235, %v236
    %v238 = vrot.slane %v218, 7
    %v239 = vrot.slane %v220, 7
    %v240 = vsel %vm234, %v238, %v239
    %v241 = vrot.slane %v225, 7
    %v242 = vrot.slane %v227, 7
    %v243 = vsel %vm234, %v241, %v242
    %v244 = vrot.slane %v211, 7
    %v245 = vsel %vm234, %v236, %v244
    %v246 = vrot.slane %v219, 7
    %v247 = vsel %vm234, %v239, %v246
    %v248 = vrot.slane %v229, 7
    %v249 = vsel %vm234, %v242, %v248
    %v250 = vrot.slane %v212, 7
    %v251 = vsel %vm234, %v235, %v250
    %v252 = vrot.slane %v221, 7
    %v253 = vrot.slane %v223, 7
    %v254 = vsel %vm234, %v252, %v253
    %v255 = vrot.slane %v230, 7
    %v256 = vrot.slane %v232, 7
    %v257 = vsel %vm234, %v255, %v256
    %v258 = vrot.slane %v213, 7
    %v259 = vsel %vm234, %v250, %v258
    %v260 = vrot.slane %v222, 7
    %v261 = vsel %vm234, %v253, %v260
    %v262 = vrot.slane %v233, 7
    %v263 = vsel %vm234, %v256, %v262
    %v276 = vld [vmem:[#allocation2] sm:$0xff]
    %v277 = vld [vmem:[#allocation2 + $0x8] sm:$0xff]
    %v278 = vld [vmem:[#allocation2 + $0x10] sm:$0xff]
    %v279 = vld [vmem:[#allocation2 + $0x18] sm:$0xff]
    %v280 = vld [vmem:[#allocation2 + $0x20] sm:$0xff]
    %v281 = vld [vmem:[#allocation2 + $0x28] sm:$0xff]
    %v282 = vld [vmem:[#allocation2 + $0x30] sm:$0xff]
    %v283 = vld [vmem:[#allocation2 + $0x38] sm:$0xff]
    %v284 = vld [vmem:[#allocation2 + $0x40] sm:$0xff]
    %v285 = vld [vmem:[#allocation2 + $0x48] sm:$0xff]
    %v286 = vld [vmem:[#allocation2 + $0x50] sm:$0xff]
    %v287 = vld [vmem:[#allocation2 + $0x58] sm:$0xff]
    %v288 = vld [vmem:[#allocation2 + $0x60] sm:$0xff]
    %v289 = vld [vmem:[#allocation2 + $0x68] sm:$0xff]
    %v290 = vld [vmem:[#allocation2 + $0x70] sm:$0xff]
    %v291 = vld [vmem:[#allocation2 + $0x78] sm:$0xff]
    %v292 = vld [vmem:[#allocation2 + $0x80] sm:$0xff]
    %v293 = vld [vmem:[#allocation2 + $0x88] sm:$0xff]
    %v294 = vld [vmem:[#allocation2 + $0x90] sm:$0xff]
    %v295 = vld [vmem:[#allocation2 + $0x98] sm:$0xff]
    %v296 = vld [vmem:[#allocation2 + $0xa0] sm:$0xff]
    %v297 = vld [vmem:[#allocation2 + $0xa8] sm:$0xff]
    %v298 = vld [vmem:[#allocation2 + $0xb0] sm:$0xff]
    %v299 = vld [vmem:[#allocation2 + $0xb8] sm:$0xff]
    %v300 = vld [vmem:[#allocation2 + $0xc0] sm:$0xff]
    %v301 = vld [vmem:[#allocation2 + $0xc8] sm:$0xff]
    %v302 = vld [vmem:[#allocation2 + $0xd0] sm:$0xff]
    %v303 = vld [vmem:[#allocation2 + $0xd8] sm:$0xff]
    %v304 = vld [vmem:[#allocation2 + $0xe0] sm:$0xff]
    %v305 = vld [vmem:[#allocation2 + $0xe8] sm:$0xff]
    %v306 = vld [vmem:[#allocation2 + $0xf0] sm:$0xff]
    %v307 = vld [vmem:[#allocation2 + $0xf8] sm:$0xff]
    %v308 = vld [vmem:[#allocation2 + $0x100] sm:$0xff]
    %v309 = vld [vmem:[#allocation2 + $0x108] sm:$0xff]
    %v310 = vld [vmem:[#allocation2 + $0x110] sm:$0xff]
    %v311 = vld [vmem:[#allocation2 + $0x118] sm:$0xff]
    %v312 = vld [vmem:[#allocation2 + $0x120] sm:$0xff]
    %v313 = vld [vmem:[#allocation2 + $0x128] sm:$0xff]
    %v314 = vld [vmem:[#allocation2 + $0x130] sm:$0xff]
    %v315 = vld [vmem:[#allocation2 + $0x138] sm:$0xff]
    %v316 = vld [vmem:[#allocation2 + $0x140] sm:$0xff]
    %v317 = vld [vmem:[#allocation2 + $0x148] sm:$0xff]
    %v318 = vld [vmem:[#allocation2 + $0x150] sm:$0xff]
    %v319 = vld [vmem:[#allocation2 + $0x158] sm:$0xff]
    %v320 = vld [vmem:[#allocation2 + $0x160] sm:$0xff]
    %v321 = vld [vmem:[#allocation2 + $0x168] sm:$0xff]
    %v322 = vld [vmem:[#allocation2 + $0x170] sm:$0xff]
    %v323 = vld [vmem:[#allocation2 + $0x178] sm:$0xff]
    %v324 = vld [vmem:[%s4] sm:$0x1]
    %v326 = vperm.slane %v324, 0
    %328 = vmatpush.msra.mxu0 %v291
    %329 = vmatpush.msra.mxu0 %v290
    %330 = vmatpush.msra.mxu0 %v289
    %331 = vmatpush.msra.mxu0 %v288
    %332 = vmatpush.msra.mxu0 %v287
    %333 = vmatpush.msra.mxu0 %v286
    %334 = vmatpush.msra.mxu0 %v285
    %335 = vmatpush.msra.mxu0 %v284
    %336 = vmatpush.msra.mxu0 %v283
    %337 = vmatpush.msra.mxu0 %v282
    %338 = vmatpush.msra.mxu0 %v281
    %339 = vmatpush.msra.mxu0 %v280
    %340 = vmatpush.msra.mxu0 %v279
    %341 = vmatpush.msra.mxu0 %v278
    %342 = vmatpush.msra.mxu0 %v277
    %343 = vmatpush.msra.mxu0 %v276
    %344 = vmatmul.f32.gmra.mxu0 %v237
    %v345 = vpop.f32.mrf.mxu0
    %v346 = vadd.f32 %v326, %v345
    %347 = vmatmul.f32.gmra.mxu0 %v245
    %v348 = vpop.f32.mrf.mxu0
    %v349 = vadd.f32 %v326, %v348
    %350 = vmatmul.f32.gmra.mxu0 %v251
    %v351 = vpop.f32.mrf.mxu0
    %v352 = vadd.f32 %v326, %v351
    %353 = vmatmul.f32.gmra.mxu0 %v259
    %v354 = vpop.f32.mrf.mxu0
    %v355 = vadd.f32 %v326, %v354
    %356 = vdwg.mxu0
    %357 = vmatpush.msra.mxu0 %v307
    %358 = vmatpush.msra.mxu0 %v306
    %359 = vmatpush.msra.mxu0 %v305
    %360 = vmatpush.msra.mxu0 %v304
    %361 = vmatpush.msra.mxu0 %v303
    %362 = vmatpush.msra.mxu0 %v302
    %363 = vmatpush.msra.mxu0 %v301
    %364 = vmatpush.msra.mxu0 %v300
    %365 = vmatpush.msra.mxu0 %v299
    %366 = vmatpush.msra.mxu0 %v298
    %367 = vmatpush.msra.mxu0 %v297
    %368 = vmatpush.msra.mxu0 %v296
    %369 = vmatpush.msra.mxu0 %v295
    %370 = vmatpush.msra.mxu0 %v294
    %371 = vmatpush.msra.mxu0 %v293
    %372 = vmatpush.msra.mxu0 %v292
    %373 = vmatmul.f32.gmra.mxu0 %v240
    %v374 = vpop.f32.mrf.mxu0
    %v375 = vadd.f32 %v346, %v374
    %376 = vmatmul.f32.gmra.mxu0 %v247
    %v377 = vpop.f32.mrf.mxu0
    %v378 = vadd.f32 %v349, %v377
    %379 = vmatmul.f32.gmra.mxu0 %v254
    %v380 = vpop.f32.mrf.mxu0
    %v381 = vadd.f32 %v352, %v380
    %382 = vmatmul.f32.gmra.mxu0 %v261
    %v383 = vpop.f32.mrf.mxu0
    %v384 = vadd.f32 %v355, %v383
    %385 = vdwg.mxu0
    %386 = vmatpush.msra.mxu0 %v323
    %387 = vmatpush.msra.mxu0 %v322
    %388 = vmatpush.msra.mxu0 %v321
    %389 = vmatpush.msra.mxu0 %v320
    %390 = vmatpush.msra.mxu0 %v319
    %391 = vmatpush.msra.mxu0 %v318
    %392 = vmatpush.msra.mxu0 %v317
    %393 = vmatpush.msra.mxu0 %v316
    %394 = vmatpush.msra.mxu0 %v315
    %395 = vmatpush.msra.mxu0 %v314
    %396 = vmatpush.msra.mxu0 %v313
    %397 = vmatpush.msra.mxu0 %v312
    %398 = vmatpush.msra.mxu0 %v311
    %399 = vmatpush.msra.mxu0 %v310
    %400 = vmatpush.msra.mxu0 %v309
    %401 = vmatpush.msra.mxu0 %v308
    %402 = vmatmul.f32.gmra.mxu0 %v243
    %v403 = vpop.f32.mrf.mxu0
    %v404 = vadd.f32 %v375, %v403
    %405 = vmatmul.f32.gmra.mxu0 %v249
    %v406 = vpop.f32.mrf.mxu0
    %v407 = vadd.f32 %v378, %v406
    %408 = vmatmul.f32.gmra.mxu0 %v257
    %v409 = vpop.f32.mrf.mxu0
    %v410 = vadd.f32 %v381, %v409
    %411 = vmatmul.f32.gmra.mxu0 %v263
    %v412 = vpop.f32.mrf.mxu0
    %v413 = vadd.f32 %v384, %v412
    %414 = vdwg.mxu0
    %v415 = vmax.f32 %v404, 0.0
    %v416 = vmax.f32 %v407, 0.0
    %v417 = vmax.f32 %v410, 0.0
    %v418 = vmax.f32 %v413, 0.0
    %419 = vst [vmem:[#allocation5] sm:$0xff] %v415
    %420 = vst [vmem:[#allocation5 + $0x8] sm:$0xff] %v416
    %421 = vst [vmem:[#allocation5 + $0x10] sm:$0xff] %v417
    %422 = vst [vmem:[#allocation5 + $0x18] sm:$0xff] %v418
    // Predicated region
    $region26: #{tpu_custom_call.1} parent=1 // pred_check
      _
    $region27: #{tpu_custom_call.1} parent=1 // pred_check_branch
      %424 = sbr.rel (0) target = $region29
    $region28: #{tpu_custom_call.1} parent=1 // pred_region
      %426 = vsyncadd [#allocation4], 0
      %s427 = sshll.u32 [#allocation5], 4
      %s428 = int_to_ptr.vmem [resolvable:$true] %s427
      %s429 = sshll.u32 %s5, 4
      %s430 = int_to_ptr.hbm [resolvable:$true] %s429
      %435 = dma.vmem_to_hbm [thread:$0]  %s428, 512, %s430, [#allocation4], 128, 128, 8
    $region29: #{tpu_custom_call.1} parent=1 // pred_fallthru
      _
    // Predicated region
    $region30: #{tpu_custom_call.1} parent=1 // pred_check
      _
    $region31: #{tpu_custom_call.1} parent=1 // pred_check_branch
      %437 = sbr.rel (0) target = $region33
    $region32: #{tpu_custom_call.1} parent=1 // pred_region
      %439 = dma.done [#allocation4], 512
    $region33: #{tpu_custom_call.1} parent=1 // pred_fallthru
      _
    %440 = vsyncpa [#allocation3], 1
    %441 = vsyncpa [#allocation4], 1

</llo_original>
